<compile_context>
chip_gen: v6e
topology: v6e:2x2x1
jax: 0.10.0
libtpu: 0.0.40
codegen_flags: <defaults>
</compile_context>

<pallas_src>
import jax
import jax.numpy as jnp
from jax import lax
from jax.experimental import pallas as pl
from jax.experimental.pallas import tpu as pltpu


# ---------------------------------------------------------------------------
# Kernels
# ---------------------------------------------------------------------------

def _mlp_kernel_fused(x_ref, w1_ref, b1_ref, w2_ref, b2_ref, o_ref):
    """Whole hidden dim resident (n_h == 1): fc1 -> ReLU -> fc2, no scratch."""
    # fc1: contract last axes of x[B, Din] and w1[H, Din] (PyTorch layout).
    h = lax.dot_general(
        x_ref[...], w1_ref[...],
        dimension_numbers=(((1,), (1,)), ((), ())),
        preferred_element_type=jnp.float32)
    h = jnp.maximum(h + b1_ref[...], 0.0)          # bias + ReLU in f32
    w2 = w2_ref[...]
    # Only downcast the activation when weights are sub-f32 (bf16 MXU rate).
    h_in = h if w2.dtype == jnp.float32 else h.astype(w2.dtype)
    out = lax.dot_general(
        h_in, w2,
        dimension_numbers=(((1,), (1,)), ((), ())),
        preferred_element_type=jnp.float32) + b2_ref[...]
    o_ref[...] = out.astype(o_ref.dtype)


def _mlp_kernel_acc(x_ref, w1_ref, b1_ref, w2_ref, b2_ref, o_ref, acc_ref):
    """Hidden dim streamed in tiles (n_h > 1): accumulate fc2 in f32 VMEM."""
    k = pl.program_id(1)

    @pl.when(k == 0)
    def _init():
        acc_ref[...] = jnp.zeros_like(acc_ref)

    h = lax.dot_general(
        x_ref[...], w1_ref[...],
        dimension_numbers=(((1,), (1,)), ((), ())),
        preferred_element_type=jnp.float32)
    h = jnp.maximum(h + b1_ref[...], 0.0)
    w2 = w2_ref[...]
    h_in = h if w2.dtype == jnp.float32 else h.astype(w2.dtype)
    acc_ref[...] += lax.dot_general(
        h_in, w2,
        dimension_numbers=(((1,), (1,)), ((), ())),
        preferred_element_type=jnp.float32)

    @pl.when(k == pl.num_programs(1) - 1)
    def _finalize():
        o_ref[...] = (acc_ref[...] + b2_ref[...]).astype(o_ref.dtype)


# ---------------------------------------------------------------------------
# Wrapper
# ---------------------------------------------------------------------------

def _round_up(x, m):
    return ((x + m - 1) // m) * m


def _vmem_capacity_bytes():
    try:
        info = pltpu.get_tpu_info()
        cap = int(getattr(info, "vmem_capacity_bytes", 0))
        if cap > 0:
            return cap
    except Exception:
        pass
    return 64 * 1024 * 1024   # conservative default (v7x per-TC VMEM)


def mlp_forward(x, w1, b1, w2, b2, *, tile_b=None, tile_h=None,
                compute_dtype=None, vmem_limit_bytes=None):
    """Fused MLP forward: relu(x @ w1.T + b1) @ w2.T + b2.

    x:  [B, D_in]
    w1: [H, D_in]    b1: [H]       (PyTorch nn.Linear layout, never transposed)
    w2: [D_out, H]   b2: [D_out]
    compute_dtype: STRONGLY recommended jnp.bfloat16 for f32 callers that can
        tolerate it — 3-8x MXU rate, half the weight bytes streamed, half the
        resident-weight VMEM; accumulation stays f32 on the MXU either way.
    """
    B, D_in = x.shape
    H = w1.shape[0]
    D_out = w2.shape[0]
    out_dtype = x.dtype

    if compute_dtype is not None:
        x = x.astype(compute_dtype)
        w1 = w1.astype(compute_dtype)
        w2 = w2.astype(compute_dtype)

    # Lane-dense output: pad D_out up to a multiple of 128 with zero weight
    # columns / bias entries so output stores are full-lane vst (not vst.msk).
    d_out_p = max(128, _round_up(D_out, 128))
    if d_out_p != D_out:
        w2 = jnp.pad(w2, ((0, d_out_p - D_out), (0, 0)))
        b2 = jnp.pad(b2, ((0, d_out_p - D_out),))

    # Biases are added to f32 values inside the kernel.
    b1_r = b1.reshape(1, H).astype(jnp.float32)
    b2_r = b2.reshape(1, d_out_p).astype(jnp.float32)

    x_item = jnp.dtype(x.dtype).itemsize
    w_item = jnp.dtype(w1.dtype).itemsize     # weights may differ from x dtype
    o_item = jnp.dtype(out_dtype).itemsize
    sub = 16 if x_item < 4 else 8             # sublane multiple (bf16:16, f32:8)

    # ------------------- VMEM budget (generation-aware) -------------------
    vmem_cap = _vmem_capacity_bytes()
    usable = int(vmem_cap * 0.70)             # headroom for compiler scratch

    weight_bytes = (H * D_in + H * d_out_p) * w_item + (H + d_out_p) * 4

    def _fused_footprint(tb):
        # resident weights (single-buffered) + 2x x / 2x out tiles
        # + f32 fc1 intermediate (+ its low-precision cast copy) + f32 result.
        h_bytes = tb * H * 4 + (tb * H * w_item if w_item < 4 else 0)
        return (weight_bytes
                + 2 * tb * D_in * x_item
                + 2 * tb * d_out_p * o_item
                + tb * d_out_p * 4
                + h_bytes)

    def _stream_footprint(tb, th):
        h_bytes = tb * th * 4 + (tb * th * w_item if w_item < 4 else 0)
        return (2 * tb * D_in * x_item                       # x (double buf)
                + 2 * th * (D_in + d_out_p) * w_item         # w1/w2 tiles (x2)
                + 2 * th * 4 + d_out_p * 4                   # b1 tiles + b2
                + 2 * tb * d_out_p * o_item                  # out (double buf)
                + tb * d_out_p * 4                           # f32 accumulator
                + h_bytes)

    # ------------------------------ batch tile -----------------------------
    user_tile_b = tile_b is not None
    if tile_b is None:
        # Large batch tile: arithmetic intensity of the streaming path is
        # ~2*tile_b/itemsize flops per byte of weight traffic.
        tile_b = 512
    tile_b = min(tile_b, B)
    if tile_b < B:
        tile_b = max(sub, (tile_b // sub) * sub)
    if not user_tile_b and tile_b == B and B >= 2 * sub:
        # Expose >= 2 batch blocks so the "parallel" axis can shard across
        # both TensorCores on v7x (one extra grid step is noise on v5e/v6e).
        tile_b = _round_up(pl.cdiv(B, 2), sub)

    # ------------------- hidden tile / residency decision ------------------
    if tile_h is None:
        resident = _fused_footprint(tile_b) <= usable
        if not resident and not user_tile_b and tile_b > 256:
            # Shrinking the batch tile is cheaper than re-streaming the
            # weights once per batch tile — try to stay weight-resident.
            if _fused_footprint(256) <= usable:
                tile_b, resident = 256, True
        if resident:
            tile_h = H
        else:
            # Largest 128-aligned divisor of H that fits the budget,
            # preferring 256 multiples (v6e/v7x MXU passes are 256 wide).
            divisors = [d for d in range(128, H, 128) if H % d == 0]
            pick = None
            for want_256 in (True, False):
                for d in sorted(divisors, reverse=True):
                    if want_256 and d % 256 != 0:
                        continue
                    if _stream_footprint(tile_b, d) <= usable:
                        pick = d
                        break
                if pick is not None:
                    break
            if pick is None:
                pick = min(divisors) if divisors else H
            tile_h = pick
            # TODO(synk): for very large weights with small B, add the
            # aliased-output schedule (k outer, input_output_aliases) that
            # streams the weights exactly once per call.

    tile_h = min(tile_h, H)
    if tile_h < H:
        # Reduction tiles must divide H exactly (padded blocks would pollute
        # the accumulator); clamp to a 128-multiple divisor or fall back to H.
        tile_h = max(128, (tile_h // 128) * 128)
        while tile_h > 128 and H % tile_h != 0:
            tile_h -= 128
        if H % tile_h != 0:
            tile_h = H

    n_b = pl.cdiv(B, tile_b)
    n_h = pl.cdiv(H, tile_h)

    # ------------------------ VMEM limit & cost hint -----------------------
    footprint = _fused_footprint(tile_b) if n_h == 1 else _stream_footprint(tile_b, tile_h)
    if vmem_limit_bytes is None:
        vmem_limit_bytes = min(vmem_cap,
                               max(int(footprint * 1.25) + (2 << 20), 32 << 20))

    cost = pl.CostEstimate(
        flops=2 * B * H * (D_in + d_out_p),
        transcendentals=0,
        bytes_accessed=int(B * D_in * x_item + B * d_out_p * o_item
                           + (1 if n_h == 1 else n_b) * weight_bytes),
    )

    def _build(single_buffer_invariant):
        # Grid-invariant operands don't need double buffering -> halves VMEM.
        inv = {"pipeline_mode": pl.Buffered(1)} if single_buffer_invariant else {}
        if n_h == 1:
            grid_spec = pltpu.PrefetchScalarGridSpec(
                num_scalar_prefetch=0,
                grid=(n_b,),
                in_specs=[
                    pl.BlockSpec((tile_b, D_in), lambda i: (i, 0)),
                    pl.BlockSpec((H, D_in),      lambda i: (0, 0), **inv),
                    pl.BlockSpec((1, H),         lambda i: (0, 0), **inv),
                    pl.BlockSpec((d_out_p, H),   lambda i: (0, 0), **inv),
                    pl.BlockSpec((1, d_out_p),   lambda i: (0, 0), **inv),
                ],
                out_specs=pl.BlockSpec((tile_b, d_out_p), lambda i: (i, 0)),
            )
            kernel, dims = _mlp_kernel_fused, ("parallel",)
        else:
            # TODO(synk): sweep pl.Buffered(3) on the streamed weight tiles if
            # the DMA is still exposed after the tile_b increase.
            grid_spec = pltpu.PrefetchScalarGridSpec(
                num_scalar_prefetch=0,
                grid=(n_b, n_h),                       # reduction axis last
                in_specs=[
                    pl.BlockSpec((tile_b, D_in),   lambda i, k: (i, 0)),
                    pl.BlockSpec((tile_h, D_in),   lambda i, k: (k, 0)),
                    pl.BlockSpec((1, tile_h),      lambda i, k: (0, k)),
                    pl.BlockSpec((d_out_p, tile_h), lambda i, k: (0, k)),
                    pl.BlockSpec((1, d_out_p),     lambda i, k: (0, 0), **inv),
                ],
                out_specs=pl.BlockSpec((tile_b, d_out_p), lambda i, k: (i, 0)),
                scratch_shapes=[pltpu.VMEM((tile_b, d_out_p), jnp.float32)],
            )
            kernel, dims = _mlp_kernel_acc, ("parallel", "arbitrary")
        return pl.pallas_call(
            kernel,
            out_shape=jax.ShapeDtypeStruct((B, d_out_p), out_dtype),
            grid_spec=grid_spec,
            compiler_params=pltpu.CompilerParams(
                dimension_semantics=dims,
                vmem_limit_bytes=int(vmem_limit_bytes)),
            cost_estimate=cost,
        )

    # Note: when B % tile_b != 0 the padded tail rows of x are undefined; this
    # is safe because rows are independent and the tail output rows are never
    # written back to the valid region of the output.
    args = (x, w1, b1_r, w2, b2_r)
    try:
        out = _build(True)(*args)
    except Exception:
        # Fallback: default double-buffering if single-buffered grid-invariant
        # operands (pl.Buffered(1)) are rejected by this Pallas version.
        out = _build(False)(*args)

    if d_out_p != D_out:
        out = out[:, :D_out]
    return out


# ---------------------------------------------------------------------------
# Init / reference / self-test
# ---------------------------------------------------------------------------

def init_mlp_params(key, input_dim, hidden_dim, output_dim, dtype=jnp.float32):
    """Deterministic init matching nn.Linear's U(-1/sqrt(fan_in), 1/sqrt(fan_in))."""
    k1, k2, k3, k4 = jax.random.split(key, 4)
    lim1 = 1.0 / (input_dim ** 0.5)
    lim2 = 1.0 / (hidden_dim ** 0.5)
    w1 = jax.random.uniform(k1, (hidden_dim, input_dim), dtype, -lim1, lim1)
    b1 = jax.random.uniform(k2, (hidden_dim,), dtype, -lim1, lim1)
    w2 = jax.random.uniform(k3, (output_dim, hidden_dim), dtype, -lim2, lim2)
    b2 = jax.random.uniform(k4, (output_dim,), dtype, -lim2, lim2)
    return w1, b1, w2, b2


def _ref(x, w1, b1, w2, b2):
    return jnp.maximum(x @ w1.T + b1, 0.0) @ w2.T + b2


if __name__ == "__main__":
    key = jax.random.PRNGKey(0)
    kx, kp, kx2, kp2 = jax.random.split(key, 4)

    # --- Test 1: toy shapes (fused weight-resident path, padded D_out) ---
    batch, input_dim, hidden_dim, output_dim = 8, 32, 64, 16
    x = jax.random.normal(kx, (batch, input_dim), jnp.float32)
    w1, b1, w2, b2 = init_mlp_params(kp, input_dim, hidden_dim, output_dim)

    out = mlp_forward(x, w1, b1, w2, b2)
    jax.block_until_ready(out)
    assert out.shape == (batch, output_dim)
    assert jnp.allclose(out, _ref(x, w1, b1, w2, b2), atol=1e-5, rtol=1e-5)

    # --- Test 2: batch tiling (ragged last tile) + hidden-dim reduction ---
    B2, D_in2, H2, D_out2 = 40, 128, 256, 128
    x2 = jax.random.normal(kx2, (B2, D_in2), jnp.float32)
    w1b, b1b, w2b, b2b = init_mlp_params(kp2, D_in2, H2, D_out2)

    out2 = mlp_forward(x2, w1b, b1b, w2b, b2b, tile_b=16, tile_h=128)
    jax.block_until_ready(out2)
    assert out2.shape == (B2, D_out2)
    assert jnp.allclose(out2, _ref(x2, w1b, b1b, w2b, b2b), atol=1e-4, rtol=1e-4)

    # --- Test 3: bf16 compute path (MXU peak rate), f32 accumulation ---
    out3 = mlp_forward(x, w1, b1, w2, b2, compute_dtype=jnp.bfloat16)
    jax.block_until_ready(out3)
    assert out3.shape == (batch, output_dim)
    assert jnp.allclose(out3, _ref(x, w1, b1, w2, b2), atol=7.5e-2, rtol=7.5e-2)

    print("KERNEL_OK")
</pallas_src>

<mosaic_0001>
module attributes {stable_mosaic.version = 11 : i64} {
  func.func @_mlp_kernel_fused(%arg0: i32, %arg1: memref<8x32xf32, #tpu.memory_space<vmem>>, %arg2: memref<64x32xf32, #tpu.memory_space<vmem>>, %arg3: memref<1x64xf32, #tpu.memory_space<vmem>>, %arg4: memref<128x64xf32, #tpu.memory_space<vmem>>, %arg5: memref<1x128xf32, #tpu.memory_space<vmem>>, %arg6: memref<8x128xf32, #tpu.memory_space<vmem>>) attributes {dimension_semantics = [#tpu.dimension_semantics<parallel>], iteration_bounds = array<i64: 1>, scalar_prefetch = 0 : i64, scratch_operands = 0 : i64, tpu.core_type = #tpu.core_type<tc>, window_params = [{transform_indices = @transform_0, window_bounds = array<i64: 8, 32>}, {pipeline_mode = #tpu.pipeline_mode<synchronous>, transform_indices = @transform_1, window_bounds = array<i64: 64, 32>}, {pipeline_mode = #tpu.pipeline_mode<synchronous>, transform_indices = @transform_2, window_bounds = array<i64: 1, 64>}, {pipeline_mode = #tpu.pipeline_mode<synchronous>, transform_indices = @transform_3, window_bounds = array<i64: 128, 64>}, {pipeline_mode = #tpu.pipeline_mode<synchronous>, transform_indices = @transform_4, window_bounds = array<i64: 1, 128>}, {transform_indices = @transform_5, window_bounds = array<i64: 8, 128>}]} {
    %c0 = arith.constant 0 : index
    %c0_0 = arith.constant 0 : index
    %0 = vector.load %arg1[%c0, %c0_0] : memref<8x32xf32, #tpu.memory_space<vmem>>, vector<8x32xf32>
    %c0_1 = arith.constant 0 : index
    %c0_2 = arith.constant 0 : index
    %1 = vector.load %arg2[%c0_1, %c0_2] : memref<64x32xf32, #tpu.memory_space<vmem>>, vector<64x32xf32>
    %cst = arith.constant dense<0.000000e+00> : vector<8x64xf32>
    %2 = tpu.matmul %0, %1, %cst {dimension_numbers = #tpu.dot_dimension_numbers<[1], [1], [0], [0], [0, 0, 1, 0], [], []>} : vector<8x32xf32>, vector<64x32xf32>, vector<8x64xf32> -> vector<8x64xf32>
    %c0_3 = arith.constant 0 : index
    %c0_4 = arith.constant 0 : index
    %3 = vector.load %arg3[%c0_3, %c0_4] : memref<1x64xf32, #tpu.memory_space<vmem>>, vector<1x64xf32>
    %4 = vector.broadcast %3 : vector<1x64xf32> to vector<8x64xf32>
    %5 = arith.addf %2, %4 : vector<8x64xf32>
    %cst_5 = arith.constant 0.000000e+00 : f32
    %6 = vector.broadcast %cst_5 : f32 to vector<8x64xf32>
    %7 = arith.maximumf %5, %6 : vector<8x64xf32>
    %c0_6 = arith.constant 0 : index
    %c0_7 = arith.constant 0 : index
    %8 = vector.load %arg4[%c0_6, %c0_7] : memref<128x64xf32, #tpu.memory_space<vmem>>, vector<128x64xf32>
    %cst_8 = arith.constant dense<0.000000e+00> : vector<8x128xf32>
    %9 = tpu.matmul %7, %8, %cst_8 {dimension_numbers = #tpu.dot_dimension_numbers<[1], [1], [0], [0], [0, 0, 1, 0], [], []>} : vector<8x64xf32>, vector<128x64xf32>, vector<8x128xf32> -> vector<8x128xf32>
    %c0_9 = arith.constant 0 : index
    %c0_10 = arith.constant 0 : index
    %10 = vector.load %arg5[%c0_9, %c0_10] : memref<1x128xf32, #tpu.memory_space<vmem>>, vector<1x128xf32>
    %11 = vector.broadcast %10 : vector<1x128xf32> to vector<8x128xf32>
    %12 = arith.addf %9, %11 : vector<8x128xf32>
    %c0_11 = arith.constant 0 : index
    %c0_12 = arith.constant 0 : index
    %13 = vector.load %arg6[%c0_11, %c0_12] : memref<8x128xf32, #tpu.memory_space<vmem>>, vector<8x128xf32>
    tpu.vector_store %arg6[%c0_11, %c0_12], %12 {strides = array<i32>} : memref<8x128xf32, #tpu.memory_space<vmem>>, vector<8x128xf32>,
    return
  }
  func.func @transform_0(%arg0: i32) -> (i32, i32) {
    %c0_i32 = arith.constant 0 : i32
    %c0_i32_0 = arith.constant 0 : i32
    return %arg0, %c0_i32 : i32, i32
  }
  func.func @transform_1(%arg0: i32) -> (i32, i32) {
    %c0_i32 = arith.constant 0 : i32
    %c0_i32_0 = arith.constant 0 : i32
    %c0_i32_1 = arith.constant 0 : i32
    return %c0_i32, %c0_i32_0 : i32, i32
  }
  func.func @transform_2(%arg0: i32) -> (i32, i32) {
    %c0_i32 = arith.constant 0 : i32
    %c0_i32_0 = arith.constant 0 : i32
    %c0_i32_1 = arith.constant 0 : i32
    return %c0_i32, %c0_i32_0 : i32, i32
  }
  func.func @transform_3(%arg0: i32) -> (i32, i32) {
    %c0_i32 = arith.constant 0 : i32
    %c0_i32_0 = arith.constant 0 : i32
    %c0_i32_1 = arith.constant 0 : i32
    return %c0_i32, %c0_i32_0 : i32, i32
  }
  func.func @transform_4(%arg0: i32) -> (i32, i32) {
    %c0_i32 = arith.constant 0 : i32
    %c0_i32_0 = arith.constant 0 : i32
    %c0_i32_1 = arith.constant 0 : i32
    return %c0_i32, %c0_i32_0 : i32, i32
  }
  func.func @transform_5(%arg0: i32) -> (i32, i32) {
    %c0_i32 = arith.constant 0 : i32
    %c0_i32_0 = arith.constant 0 : i32
    return %arg0, %c0_i32 : i32, i32
  }
}

module attributes {stable_mosaic.version = 11 : i64} {
  func.func @_mlp_kernel_fused(%arg0: i32, %arg1: memref<8x32xf32, #tpu.memory_space<vmem>>, %arg2: memref<64x32xf32, #tpu.memory_space<vmem>>, %arg3: memref<1x64xf32, #tpu.memory_space<vmem>>, %arg4: memref<128x64xf32, #tpu.memory_space<vmem>>, %arg5: memref<1x128xf32, #tpu.memory_space<vmem>>, %arg6: memref<8x128xf32, #tpu.memory_space<vmem>>) attributes {dimension_semantics = [#tpu.dimension_semantics<parallel>], iteration_bounds = array<i64: 1>, scalar_prefetch = 0 : i64, scratch_operands = 0 : i64, tpu.core_type = #tpu.core_type<tc>, window_params = [{transform_indices = @transform_0, window_bounds = array<i64: 8, 32>}, {pipeline_mode = #tpu.pipeline_mode<synchronous>, transform_indices = @transform_1, window_bounds = array<i64: 64, 32>}, {pipeline_mode = #tpu.pipeline_mode<synchronous>, transform_indices = @transform_2, window_bounds = array<i64: 1, 64>}, {pipeline_mode = #tpu.pipeline_mode<synchronous>, transform_indices = @transform_3, window_bounds = array<i64: 128, 64>}, {pipeline_mode = #tpu.pipeline_mode<synchronous>, transform_indices = @transform_4, window_bounds = array<i64: 1, 128>}, {transform_indices = @transform_5, window_bounds = array<i64: 8, 128>}]} {
    %c0 = arith.constant 0 : index
    %c0_0 = arith.constant 0 : index
    %0 = vector.load %arg1[%c0, %c0_0] : memref<8x32xf32, #tpu.memory_space<vmem>>, vector<8x32xf32>
    %c0_1 = arith.constant 0 : index
    %c0_2 = arith.constant 0 : index
    %1 = vector.load %arg2[%c0_1, %c0_2] : memref<64x32xf32, #tpu.memory_space<vmem>>, vector<64x32xf32>
    %cst = arith.constant dense<0.000000e+00> : vector<8x64xf32>
    %2 = tpu.matmul %0, %1, %cst {dimension_numbers = #tpu.dot_dimension_numbers<[1], [1], [0], [0], [0, 0, 1, 0], [], []>} : vector<8x32xf32>, vector<64x32xf32>, vector<8x64xf32> -> vector<8x64xf32>
    %c0_3 = arith.constant 0 : index
    %c0_4 = arith.constant 0 : index
    %3 = vector.load %arg3[%c0_3, %c0_4] : memref<1x64xf32, #tpu.memory_space<vmem>>, vector<1x64xf32>
    %4 = vector.broadcast %3 : vector<1x64xf32> to vector<8x64xf32>
    %5 = arith.addf %2, %4 : vector<8x64xf32>
    %cst_5 = arith.constant 0.000000e+00 : f32
    %6 = vector.broadcast %cst_5 : f32 to vector<8x64xf32>
    %7 = arith.maximumf %5, %6 : vector<8x64xf32>
    %c0_6 = arith.constant 0 : index
    %c0_7 = arith.constant 0 : index
    %8 = vector.load %arg4[%c0_6, %c0_7] : memref<128x64xf32, #tpu.memory_space<vmem>>, vector<128x64xf32>
    %cst_8 = arith.constant dense<0.000000e+00> : vector<8x128xf32>
    %9 = tpu.matmul %7, %8, %cst_8 {dimension_numbers = #tpu.dot_dimension_numbers<[1], [1], [0], [0], [0, 0, 1, 0], [], []>} : vector<8x64xf32>, vector<128x64xf32>, vector<8x128xf32> -> vector<8x128xf32>
    %c0_9 = arith.constant 0 : index
    %c0_10 = arith.constant 0 : index
    %10 = vector.load %arg5[%c0_9, %c0_10] : memref<1x128xf32, #tpu.memory_space<vmem>>, vector<1x128xf32>
    %11 = vector.broadcast %10 : vector<1x128xf32> to vector<8x128xf32>
    %12 = arith.addf %9, %11 : vector<8x128xf32>
    %c0_11 = arith.constant 0 : index
    %c0_12 = arith.constant 0 : index
    %13 = vector.load %arg6[%c0_11, %c0_12] : memref<8x128xf32, #tpu.memory_space<vmem>>, vector<8x128xf32>
    tpu.vector_store %arg6[%c0_11, %c0_12], %12 {strides = array<i32>} : memref<8x128xf32, #tpu.memory_space<vmem>>, vector<8x128xf32>,
    return
  }
  func.func @transform_0(%arg0: i32) -> (i32, i32) {
    %c0_i32 = arith.constant 0 : i32
    %c0_i32_0 = arith.constant 0 : i32
    return %arg0, %c0_i32 : i32, i32
  }
  func.func @transform_1(%arg0: i32) -> (i32, i32) {
    %c0_i32 = arith.constant 0 : i32
    %c0_i32_0 = arith.constant 0 : i32
    %c0_i32_1 = arith.constant 0 : i32
    return %c0_i32, %c0_i32_0 : i32, i32
  }
  func.func @transform_2(%arg0: i32) -> (i32, i32) {
    %c0_i32 = arith.constant 0 : i32
    %c0_i32_0 = arith.constant 0 : i32
    %c0_i32_1 = arith.constant 0 : i32
    return %c0_i32, %c0_i32_0 : i32, i32
  }
  func.func @transform_3(%arg0: i32) -> (i32, i32) {
    %c0_i32 = arith.constant 0 : i32
    %c0_i32_0 = arith.constant 0 : i32
    %c0_i32_1 = arith.constant 0 : i32
    return %c0_i32, %c0_i32_0 : i32, i32
  }
  func.func @transform_4(%arg0: i32) -> (i32, i32) {
    %c0_i32 = arith.constant 0 : i32
    %c0_i32_0 = arith.constant 0 : i32
    %c0_i32_1 = arith.constant 0 : i32
    return %c0_i32, %c0_i32_0 : i32, i32
  }
  func.func @transform_5(%arg0: i32) -> (i32, i32) {
    %c0_i32 = arith.constant 0 : i32
    %c0_i32_0 = arith.constant 0 : i32
    return %arg0, %c0_i32 : i32, i32
  }
}

</mosaic_0001>

<llo_original>
// kernel: tpu_custom_call.1
$region0: #{tpu_custom_call.1}
  #allocation0 [shape = 'u32[]', space=smem, size = 0x4, offset = 0x4, fixed_abs, tag = 'smem constant byte address 0x4 - core index']
  #allocation1 [shape = 'u32[144,128]{1,0:T(1,128)}', space=vmem, size = 0x12000, scoped, tag = 'internal scratch']
  %s0 = inlined_call_operand.vmem [shape: f32[8,32], index: 0, kind: input, shape index: {}]
  %s1 = inlined_call_operand.vmem [shape: f32[64,32], index: 1, kind: input, shape index: {}]
  %s2 = inlined_call_operand.vmem [shape: f32[1,64], index: 2, kind: input, shape index: {}]
  %s3 = inlined_call_operand.vmem [shape: f32[128,64], index: 3, kind: input, shape index: {}]
  %s4 = inlined_call_operand.vmem [shape: f32[1,128], index: 4, kind: input, shape index: {}]
  %s5 = inlined_call_operand.hbm [shape: f32[8,128], index: 5, kind: output, shape index: {}]
  %s6 = sld [smem:[#allocation0]]
  $region30: #{tpu_custom_call.1} parent=0
    _
  %s8 = ssub.s32 1, %s6
  %s9 = scalar_select 0, %s8, %s6
  $region1: #{tpu_custom_call.1} parent=0
    #allocation2 [shape = 'u8[4096]{0}', space=vmem, size = 0x1000, scoped, tag = 'output window, operand 0, single buffered']
    #allocation3 [shape = 's32[1]{0}', space=sflag, size = 0x4, scoped, tag = 'scoped memory for tpu_custom_call.1']
    %10 = vsyncpa [#allocation3], 0
    // Predicated region
    $region2: #{tpu_custom_call.1} parent=1 // pred_check
      _
    $region3: #{tpu_custom_call.1} parent=1 // pred_check_branch
      %12 = sbr.rel (0) target = $region5
    $region4: #{tpu_custom_call.1} parent=1 // pred_region
      _
    $region5: #{tpu_custom_call.1} parent=1 // pred_fallthru
      _
    // Predicated region
    $region6: #{tpu_custom_call.1} parent=1 // pred_check
      _
    $region7: #{tpu_custom_call.1} parent=1 // pred_check_branch
      %14 = sbr.rel (0) target = $region9
    $region8: #{tpu_custom_call.1} parent=1 // pred_region
      _
    $region9: #{tpu_custom_call.1} parent=1 // pred_fallthru
      _
    // Predicated region
    $region10: #{tpu_custom_call.1} parent=1 // pred_check
      _
    $region11: #{tpu_custom_call.1} parent=1 // pred_check_branch
      %16 = sbr.rel (0) target = $region13
    $region12: #{tpu_custom_call.1} parent=1 // pred_region
      _
    $region13: #{tpu_custom_call.1} parent=1 // pred_fallthru
      _
    // Predicated region
    $region14: #{tpu_custom_call.1} parent=1 // pred_check
      _
    $region15: #{tpu_custom_call.1} parent=1 // pred_check_branch
      %18 = sbr.rel (0) target = $region17
    $region16: #{tpu_custom_call.1} parent=1 // pred_region
      _
    $region17: #{tpu_custom_call.1} parent=1 // pred_fallthru
      _
    // Predicated region
    $region18: #{tpu_custom_call.1} parent=1 // pred_check
      _
    $region19: #{tpu_custom_call.1} parent=1 // pred_check_branch
      %20 = sbr.rel (0) target = $region21
    $region20: #{tpu_custom_call.1} parent=1 // pred_region
      _
    $region21: #{tpu_custom_call.1} parent=1 // pred_fallthru
      _
    %v21 = vld [vmem:[%s0] sm:$0xff]
    %v22 = vld [vmem:[%s1] sm:$0xff]
    %v23 = vld [vmem:[%s1 + $0x8] sm:$0xff]
    %v24 = vld [vmem:[%s1 + $0x10] sm:$0xff]
    %v25 = vld [vmem:[%s1 + $0x18] sm:$0xff]
    %v26 = vld [vmem:[%s1 + $0x20] sm:$0xff]
    %v27 = vld [vmem:[%s1 + $0x28] sm:$0xff]
    %v28 = vld [vmem:[%s1 + $0x30] sm:$0xff]
    %v29 = vld [vmem:[%s1 + $0x38] sm:$0xff]
    %v30 = vld [vmem:[%s2] sm:$0x1]
    %v32 = vlaneseq
    %v33 = vshrl.u32 %v32, 7
    %v34 = vsub.s32 0, %v33
    %v35 = vrot.slane %v30, %v34
    %vm37 = vcmask 261120
    %v39 = vsel %vm37, %v21, 0
    %v42 = vsel %vm37, %v22, 0
    %v45 = vsel %vm37, %v23, 0
    %v48 = vsel %vm37, %v24, 0
    %v51 = vsel %vm37, %v25, 0
    %v54 = vsel %vm37, %v26, 0
    %v57 = vsel %vm37, %v27, 0
    %v60 = vsel %vm37, %v28, 0
    %v63 = vsel %vm37, %v29, 0
    %65 = vmatprep.subr.mxu0 0.0
    %66 = vmatpush1.xpose.msra.mxu0 0.0
    %67 = vmatprep.subr.mxu0 0.0
    %68 = vmatpush1.xpose.msra.mxu0 0.0
    %69 = vmatprep.subr.mxu0 0.0
    %70 = vmatpush1.xpose.msra.mxu0 0.0
    %71 = vmatprep.subr.mxu0 0.0
    %72 = vmatpush1.xpose.msra.mxu0 0.0
    %73 = vmatprep.subr.mxu0 0.0
    %74 = vmatpush1.xpose.msra.mxu0 0.0
    %75 = vmatprep.subr.mxu0 0.0
    %76 = vmatpush1.xpose.msra.mxu0 0.0
    %77 = vmatprep.subr.mxu0 0.0
    %78 = vmatpush1.xpose.msra.mxu0 0.0
    %79 = vmatprep.subr.mxu0 0.0
    %80 = vmatpush1.xpose.msra.mxu0 0.0
    %81 = vmatprep.subr.mxu0 0.0
    %82 = vmatpush1.xpose.msra.mxu0 %v63
    %83 = vmatprep.subr.mxu0 0.0
    %84 = vmatpush1.xpose.msra.mxu0 %v60
    %85 = vmatprep.subr.mxu0 0.0
    %86 = vmatpush1.xpose.msra.mxu0 %v57
    %87 = vmatprep.subr.mxu0 0.0
    %88 = vmatpush1.xpose.msra.mxu0 %v54
    %89 = vmatprep.subr.mxu0 0.0
    %90 = vmatpush1.xpose.msra.mxu0 %v51
    %91 = vmatprep.subr.mxu0 0.0
    %92 = vmatpush1.xpose.msra.mxu0 %v48
    %93 = vmatprep.subr.mxu0 0.0
    %94 = vmatpush1.xpose.msra.mxu0 %v45
    %95 = vmatprep.subr.mxu0 0.0
    %96 = vmatpush1.xpose.msra.mxu0 %v42
    %97 = vmatprep.subr.mxu0 0.0
    %98 = vmatpush2.xpose.msra.mxu0 0.0
    %99 = vmatprep.subr.mxu0 0.0
    %100 = vmatpush2.xpose.msra.mxu0 0.0
    %101 = vmatprep.subr.mxu0 0.0
    %102 = vmatpush2.xpose.msra.mxu0 0.0
    %103 = vmatprep.subr.mxu0 0.0
    %104 = vmatpush2.xpose.msra.mxu0 0.0
    %105 = vmatprep.subr.mxu0 0.0
    %106 = vmatpush2.xpose.msra.mxu0 0.0
    %107 = vmatprep.subr.mxu0 0.0
    %108 = vmatpush2.xpose.msra.mxu0 0.0
    %109 = vmatprep.subr.mxu0 0.0
    %110 = vmatpush2.xpose.msra.mxu0 0.0
    %111 = vmatprep.subr.mxu0 0.0
    %112 = vmatpush2.xpose.msra.mxu0 0.0
    %113 = vmatprep.subr.mxu0 0.0
    %114 = vmatpush2.xpose.msra.mxu0 0.0
    %115 = vmatprep.subr.mxu0 0.0
    %116 = vmatpush2.xpose.msra.mxu0 0.0
    %117 = vmatprep.subr.mxu0 0.0
    %118 = vmatpush2.xpose.msra.mxu0 0.0
    %119 = vmatprep.subr.mxu0 0.0
    %120 = vmatpush2.xpose.msra.mxu0 0.0
    %121 = vmatprep.subr.mxu0 0.0
    %122 = vmatpush2.xpose.msra.mxu0 0.0
    %123 = vmatprep.subr.mxu0 0.0
    %124 = vmatpush2.xpose.msra.mxu0 0.0
    %125 = vmatprep.subr.mxu0 0.0
    %126 = vmatpush2.xpose.msra.mxu0 0.0
    %127 = vmatprep.subr.mxu0 0.0
    %128 = vmatpush2.xpose.msra.mxu0 0.0
    %129 = vmatprep.mubr.f32.mxu0 0.0
    %130 = vmatmul.mubr.f32.gmra.mxu0 %v39
    %v131 = vpop.f32.mrf.mxu0
    %v132 = vadd.f32 %v35, %v131
    %v133 = vpop.f32.mrf.mxu0
    %134 = vdwg.mxu0
    %v135 = vmax.f32 %v132, 0.0
    %v136 = vld [vmem:[%s3] sm:$0xff]
    %v137 = vld [vmem:[%s3 + $0x8] sm:$0xff]
    %v138 = vld [vmem:[%s3 + $0x10] sm:$0xff]
    %v139 = vld [vmem:[%s3 + $0x18] sm:$0xff]
    %v140 = vld [vmem:[%s3 + $0x20] sm:$0xff]
    %v141 = vld [vmem:[%s3 + $0x28] sm:$0xff]
    %v142 = vld [vmem:[%s3 + $0x30] sm:$0xff]
    %v143 = vld [vmem:[%s3 + $0x38] sm:$0xff]
    %v144 = vld [vmem:[%s3 + $0x40] sm:$0xff]
    %v145 = vld [vmem:[%s3 + $0x48] sm:$0xff]
    %v146 = vld [vmem:[%s3 + $0x50] sm:$0xff]
    %v147 = vld [vmem:[%s3 + $0x58] sm:$0xff]
    %v148 = vld [vmem:[%s3 + $0x60] sm:$0xff]
    %v149 = vld [vmem:[%s3 + $0x68] sm:$0xff]
    %v150 = vld [vmem:[%s3 + $0x70] sm:$0xff]
    %v151 = vld [vmem:[%s3 + $0x78] sm:$0xff]
    %v152 = vld [vmem:[%s4] sm:$0x1]
    %v154 = vlaneseq
    %v155 = vshrl.u32 %v154, 7
    %v156 = vsub.s32 0, %v155
    %v157 = vrot.slane %v152, %v156
    %vm159 = vcmask 523264
    %v161 = vsel %vm159, %v135, 0
    %v164 = vsel %vm159, %v136, 0
    %v167 = vsel %vm159, %v137, 0
    %v170 = vsel %vm159, %v138, 0
    %v173 = vsel %vm159, %v139, 0
    %v176 = vsel %vm159, %v140, 0
    %v179 = vsel %vm159, %v141, 0
    %v182 = vsel %vm159, %v142, 0
    %v185 = vsel %vm159, %v143, 0
    %v188 = vsel %vm159, %v144, 0
    %v191 = vsel %vm159, %v145, 0
    %v194 = vsel %vm159, %v146, 0
    %v197 = vsel %vm159, %v147, 0
    %v200 = vsel %vm159, %v148, 0
    %v203 = vsel %vm159, %v149, 0
    %v206 = vsel %vm159, %v150, 0
    %v209 = vsel %vm159, %v151, 0
    %211 = vmatprep.subr.mxu0 0.0
    %212 = vmatpush1.xpose.msra.mxu0 %v209
    %213 = vmatprep.subr.mxu0 0.0
    %214 = vmatpush1.xpose.msra.mxu0 %v206
    %215 = vmatprep.subr.mxu0 0.0
    %216 = vmatpush1.xpose.msra.mxu0 %v203
    %217 = vmatprep.subr.mxu0 0.0
    %218 = vmatpush1.xpose.msra.mxu0 %v200
    %219 = vmatprep.subr.mxu0 0.0
    %220 = vmatpush1.xpose.msra.mxu0 %v197
    %221 = vmatprep.subr.mxu0 0.0
    %222 = vmatpush1.xpose.msra.mxu0 %v194
    %223 = vmatprep.subr.mxu0 0.0
    %224 = vmatpush1.xpose.msra.mxu0 %v191
    %225 = vmatprep.subr.mxu0 0.0
    %226 = vmatpush1.xpose.msra.mxu0 %v188
    %227 = vmatprep.subr.mxu0 0.0
    %228 = vmatpush1.xpose.msra.mxu0 %v185
    %229 = vmatprep.subr.mxu0 0.0
    %230 = vmatpush1.xpose.msra.mxu0 %v182
    %231 = vmatprep.subr.mxu0 0.0
    %232 = vmatpush1.xpose.msra.mxu0 %v179
    %233 = vmatprep.subr.mxu0 0.0
    %234 = vmatpush1.xpose.msra.mxu0 %v176
    %235 = vmatprep.subr.mxu0 0.0
    %236 = vmatpush1.xpose.msra.mxu0 %v173
    %237 = vmatprep.subr.mxu0 0.0
    %238 = vmatpush1.xpose.msra.mxu0 %v170
    %239 = vmatprep.subr.mxu0 0.0
    %240 = vmatpush1.xpose.msra.mxu0 %v167
    %241 = vmatprep.subr.mxu0 0.0
    %242 = vmatpush1.xpose.msra.mxu0 %v164
    %243 = vmatprep.subr.mxu0 0.0
    %244 = vmatpush2.xpose.msra.mxu0 0.0
    %245 = vmatprep.subr.mxu0 0.0
    %246 = vmatpush2.xpose.msra.mxu0 0.0
    %247 = vmatprep.subr.mxu0 0.0
    %248 = vmatpush2.xpose.msra.mxu0 0.0
    %249 = vmatprep.subr.mxu0 0.0
    %250 = vmatpush2.xpose.msra.mxu0 0.0
    %251 = vmatprep.subr.mxu0 0.0
    %252 = vmatpush2.xpose.msra.mxu0 0.0
    %253 = vmatprep.subr.mxu0 0.0
    %254 = vmatpush2.xpose.msra.mxu0 0.0
    %255 = vmatprep.subr.mxu0 0.0
    %256 = vmatpush2.xpose.msra.mxu0 0.0
    %257 = vmatprep.subr.mxu0 0.0
    %258 = vmatpush2.xpose.msra.mxu0 0.0
    %259 = vmatprep.subr.mxu0 0.0
    %260 = vmatpush2.xpose.msra.mxu0 0.0
    %261 = vmatprep.subr.mxu0 0.0
    %262 = vmatpush2.xpose.msra.mxu0 0.0
    %263 = vmatprep.subr.mxu0 0.0
    %264 = vmatpush2.xpose.msra.mxu0 0.0
    %265 = vmatprep.subr.mxu0 0.0
    %266 = vmatpush2.xpose.msra.mxu0 0.0
    %267 = vmatprep.subr.mxu0 0.0
    %268 = vmatpush2.xpose.msra.mxu0 0.0
    %269 = vmatprep.subr.mxu0 0.0
    %270 = vmatpush2.xpose.msra.mxu0 0.0
    %271 = vmatprep.subr.mxu0 0.0
    %272 = vmatpush2.xpose.msra.mxu0 0.0
    %273 = vmatprep.subr.mxu0 0.0
    %274 = vmatpush2.xpose.msra.mxu0 0.0
    %275 = vmatprep.mubr.f32.mxu0 0.0
    %276 = vmatmul.mubr.f32.gmra.mxu0 %v161
    %v277 = vpop.f32.mrf.mxu0
    %v278 = vadd.f32 %v157, %v277
    %v279 = vpop.f32.mrf.mxu0
    %280 = vdwg.mxu0
    %281 = vst [vmem:[#allocation2] sm:$0xff] %v278
    // Predicated region
    $region22: #{tpu_custom_call.1} parent=1 // pred_check
      _
    $region23: #{tpu_custom_call.1} parent=1 // pred_check_branch
      %283 = sbr.rel (0) target = $region25
    $region24: #{tpu_custom_call.1} parent=1 // pred_region
      %s285 = ssub.s32 128, 128
      %286 = vsyncadd [#allocation3], %s285
      %s288 = sshll.u32 [#allocation2], 4
      %s289 = int_to_ptr.vmem [resolvable:$true] %s288
      %291 = dma.vmem_to_hbm [thread:$0]  %s289, 128, %s5, [#allocation3]
    $region25: #{tpu_custom_call.1} parent=1 // pred_fallthru
      _
    // Predicated region
    $region26: #{tpu_custom_call.1} parent=1 // pred_check
      _
    $region27: #{tpu_custom_call.1} parent=1 // pred_check_branch
      %293 = sbr.rel (0) target = $region29
    $region28: #{tpu_custom_call.1} parent=1 // pred_region
      %294 = dma.done [#allocation3], 128
    $region29: #{tpu_custom_call.1} parent=1 // pred_fallthru
      _
    %295 = vsyncpa [#allocation3], 1

// kernel: tpu_custom_call.1
$region0: #{tpu_custom_call.1}
  #allocation0 [shape = 'u32[]', space=smem, size = 0x4, offset = 0x4, fixed_abs, tag = 'smem constant byte address 0x4 - core index']
  #allocation1 [shape = 'u32[144,128]{1,0:T(1,128)}', space=vmem, size = 0x12000, scoped, tag = 'internal scratch']
  %s0 = inlined_call_operand.vmem [shape: f32[8,32], index: 0, kind: input, shape index: {}]
  %s1 = inlined_call_operand.vmem [shape: f32[64,32], index: 1, kind: input, shape index: {}]
  %s2 = inlined_call_operand.vmem [shape: f32[1,64], index: 2, kind: input, shape index: {}]
  %s3 = inlined_call_operand.vmem [shape: f32[128,64], index: 3, kind: input, shape index: {}]
  %s4 = inlined_call_operand.vmem [shape: f32[1,128], index: 4, kind: input, shape index: {}]
  %s5 = inlined_call_operand.hbm [shape: f32[8,128], index: 5, kind: output, shape index: {}]
  %s6 = sld [smem:[#allocation0]]
  $region30: #{tpu_custom_call.1} parent=0
    _
  %s8 = ssub.s32 1, %s6
  %s9 = scalar_select 0, %s8, %s6
  $region1: #{tpu_custom_call.1} parent=0
    #allocation2 [shape = 'u8[4096]{0}', space=vmem, size = 0x1000, scoped, tag = 'output window, operand 0, single buffered']
    #allocation3 [shape = 's32[1]{0}', space=sflag, size = 0x4, scoped, tag = 'scoped memory for tpu_custom_call.1']
    %10 = vsyncpa [#allocation3], 0
    // Predicated region
    $region2: #{tpu_custom_call.1} parent=1 // pred_check
      _
    $region3: #{tpu_custom_call.1} parent=1 // pred_check_branch
      %12 = sbr.rel (0) target = $region5
    $region4: #{tpu_custom_call.1} parent=1 // pred_region
      _
    $region5: #{tpu_custom_call.1} parent=1 // pred_fallthru
      _
    // Predicated region
    $region6: #{tpu_custom_call.1} parent=1 // pred_check
      _
    $region7: #{tpu_custom_call.1} parent=1 // pred_check_branch
      %14 = sbr.rel (0) target = $region9
    $region8: #{tpu_custom_call.1} parent=1 // pred_region
      _
    $region9: #{tpu_custom_call.1} parent=1 // pred_fallthru
      _
    // Predicated region
    $region10: #{tpu_custom_call.1} parent=1 // pred_check
      _
    $region11: #{tpu_custom_call.1} parent=1 // pred_check_branch
      %16 = sbr.rel (0) target = $region13
    $region12: #{tpu_custom_call.1} parent=1 // pred_region
      _
    $region13: #{tpu_custom_call.1} parent=1 // pred_fallthru
      _
    // Predicated region
    $region14: #{tpu_custom_call.1} parent=1 // pred_check
      _
    $region15: #{tpu_custom_call.1} parent=1 // pred_check_branch
      %18 = sbr.rel (0) target = $region17
    $region16: #{tpu_custom_call.1} parent=1 // pred_region
      _
    $region17: #{tpu_custom_call.1} parent=1 // pred_fallthru
      _
    // Predicated region
    $region18: #{tpu_custom_call.1} parent=1 // pred_check
      _
    $region19: #{tpu_custom_call.1} parent=1 // pred_check_branch
      %20 = sbr.rel (0) target = $region21
    $region20: #{tpu_custom_call.1} parent=1 // pred_region
      _
    $region21: #{tpu_custom_call.1} parent=1 // pred_fallthru
      _
    %v21 = vld [vmem:[%s0] sm:$0xff]
    %v22 = vld [vmem:[%s1] sm:$0xff]
    %v23 = vld [vmem:[%s1 + $0x8] sm:$0xff]
    %v24 = vld [vmem:[%s1 + $0x10] sm:$0xff]
    %v25 = vld [vmem:[%s1 + $0x18] sm:$0xff]
    %v26 = vld [vmem:[%s1 + $0x20] sm:$0xff]
    %v27 = vld [vmem:[%s1 + $0x28] sm:$0xff]
    %v28 = vld [vmem:[%s1 + $0x30] sm:$0xff]
    %v29 = vld [vmem:[%s1 + $0x38] sm:$0xff]
    %v30 = vld [vmem:[%s2] sm:$0x1]
    %v32 = vlaneseq
    %v33 = vshrl.u32 %v32, 7
    %v34 = vsub.s32 0, %v33
    %v35 = vrot.slane %v30, %v34
    %vm37 = vcmask 261120
    %v39 = vsel %vm37, %v21, 0
    %v42 = vsel %vm37, %v22, 0
    %v45 = vsel %vm37, %v23, 0
    %v48 = vsel %vm37, %v24, 0
    %v51 = vsel %vm37, %v25, 0
    %v54 = vsel %vm37, %v26, 0
    %v57 = vsel %vm37, %v27, 0
    %v60 = vsel %vm37, %v28, 0
    %v63 = vsel %vm37, %v29, 0
    %65 = vmatprep.subr.mxu0 0.0
    %66 = vmatpush1.xpose.msra.mxu0 0.0
    %67 = vmatprep.subr.mxu0 0.0
    %68 = vmatpush1.xpose.msra.mxu0 0.0
    %69 = vmatprep.subr.mxu0 0.0
    %70 = vmatpush1.xpose.msra.mxu0 0.0
    %71 = vmatprep.subr.mxu0 0.0
    %72 = vmatpush1.xpose.msra.mxu0 0.0
    %73 = vmatprep.subr.mxu0 0.0
    %74 = vmatpush1.xpose.msra.mxu0 0.0
    %75 = vmatprep.subr.mxu0 0.0
    %76 = vmatpush1.xpose.msra.mxu0 0.0
    %77 = vmatprep.subr.mxu0 0.0
    %78 = vmatpush1.xpose.msra.mxu0 0.0
    %79 = vmatprep.subr.mxu0 0.0
    %80 = vmatpush1.xpose.msra.mxu0 0.0
    %81 = vmatprep.subr.mxu0 0.0
    %82 = vmatpush1.xpose.msra.mxu0 %v63
    %83 = vmatprep.subr.mxu0 0.0
    %84 = vmatpush1.xpose.msra.mxu0 %v60
    %85 = vmatprep.subr.mxu0 0.0
    %86 = vmatpush1.xpose.msra.mxu0 %v57
    %87 = vmatprep.subr.mxu0 0.0
    %88 = vmatpush1.xpose.msra.mxu0 %v54
    %89 = vmatprep.subr.mxu0 0.0
    %90 = vmatpush1.xpose.msra.mxu0 %v51
    %91 = vmatprep.subr.mxu0 0.0
    %92 = vmatpush1.xpose.msra.mxu0 %v48
    %93 = vmatprep.subr.mxu0 0.0
    %94 = vmatpush1.xpose.msra.mxu0 %v45
    %95 = vmatprep.subr.mxu0 0.0
    %96 = vmatpush1.xpose.msra.mxu0 %v42
    %97 = vmatprep.subr.mxu0 0.0
    %98 = vmatpush2.xpose.msra.mxu0 0.0
    %99 = vmatprep.subr.mxu0 0.0
    %100 = vmatpush2.xpose.msra.mxu0 0.0
    %101 = vmatprep.subr.mxu0 0.0
    %102 = vmatpush2.xpose.msra.mxu0 0.0
    %103 = vmatprep.subr.mxu0 0.0
    %104 = vmatpush2.xpose.msra.mxu0 0.0
    %105 = vmatprep.subr.mxu0 0.0
    %106 = vmatpush2.xpose.msra.mxu0 0.0
    %107 = vmatprep.subr.mxu0 0.0
    %108 = vmatpush2.xpose.msra.mxu0 0.0
    %109 = vmatprep.subr.mxu0 0.0
    %110 = vmatpush2.xpose.msra.mxu0 0.0
    %111 = vmatprep.subr.mxu0 0.0
    %112 = vmatpush2.xpose.msra.mxu0 0.0
    %113 = vmatprep.subr.mxu0 0.0
    %114 = vmatpush2.xpose.msra.mxu0 0.0
    %115 = vmatprep.subr.mxu0 0.0
    %116 = vmatpush2.xpose.msra.mxu0 0.0
    %117 = vmatprep.subr.mxu0 0.0
    %118 = vmatpush2.xpose.msra.mxu0 0.0
    %119 = vmatprep.subr.mxu0 0.0
    %120 = vmatpush2.xpose.msra.mxu0 0.0
    %121 = vmatprep.subr.mxu0 0.0
    %122 = vmatpush2.xpose.msra.mxu0 0.0
    %123 = vmatprep.subr.mxu0 0.0
    %124 = vmatpush2.xpose.msra.mxu0 0.0
    %125 = vmatprep.subr.mxu0 0.0
    %126 = vmatpush2.xpose.msra.mxu0 0.0
    %127 = vmatprep.subr.mxu0 0.0
    %128 = vmatpush2.xpose.msra.mxu0 0.0
    %129 = vmatprep.mubr.f32.mxu0 0.0
    %130 = vmatmul.mubr.f32.gmra.mxu0 %v39
    %v131 = vpop.f32.mrf.mxu0
    %v132 = vadd.f32 %v35, %v131
    %v133 = vpop.f32.mrf.mxu0
    %134 = vdwg.mxu0
    %v135 = vmax.f32 %v132, 0.0
    %v136 = vld [vmem:[%s3] sm:$0xff]
    %v137 = vld [vmem:[%s3 + $0x8] sm:$0xff]
    %v138 = vld [vmem:[%s3 + $0x10] sm:$0xff]
    %v139 = vld [vmem:[%s3 + $0x18] sm:$0xff]
    %v140 = vld [vmem:[%s3 + $0x20] sm:$0xff]
    %v141 = vld [vmem:[%s3 + $0x28] sm:$0xff]
    %v142 = vld [vmem:[%s3 + $0x30] sm:$0xff]
    %v143 = vld [vmem:[%s3 + $0x38] sm:$0xff]
    %v144 = vld [vmem:[%s3 + $0x40] sm:$0xff]
    %v145 = vld [vmem:[%s3 + $0x48] sm:$0xff]
    %v146 = vld [vmem:[%s3 + $0x50] sm:$0xff]
    %v147 = vld [vmem:[%s3 + $0x58] sm:$0xff]
    %v148 = vld [vmem:[%s3 + $0x60] sm:$0xff]
    %v149 = vld [vmem:[%s3 + $0x68] sm:$0xff]
    %v150 = vld [vmem:[%s3 + $0x70] sm:$0xff]
    %v151 = vld [vmem:[%s3 + $0x78] sm:$0xff]
    %v152 = vld [vmem:[%s4] sm:$0x1]
    %v154 = vlaneseq
    %v155 = vshrl.u32 %v154, 7
    %v156 = vsub.s32 0, %v155
    %v157 = vrot.slane %v152, %v156
    %vm159 = vcmask 523264
    %v161 = vsel %vm159, %v135, 0
    %v164 = vsel %vm159, %v136, 0
    %v167 = vsel %vm159, %v137, 0
    %v170 = vsel %vm159, %v138, 0
    %v173 = vsel %vm159, %v139, 0
    %v176 = vsel %vm159, %v140, 0
    %v179 = vsel %vm159, %v141, 0
    %v182 = vsel %vm159, %v142, 0
    %v185 = vsel %vm159, %v143, 0
    %v188 = vsel %vm159, %v144, 0
    %v191 = vsel %vm159, %v145, 0
    %v194 = vsel %vm159, %v146, 0
    %v197 = vsel %vm159, %v147, 0
    %v200 = vsel %vm159, %v148, 0
    %v203 = vsel %vm159, %v149, 0
    %v206 = vsel %vm159, %v150, 0
    %v209 = vsel %vm159, %v151, 0
    %211 = vmatprep.subr.mxu0 0.0
    %212 = vmatpush1.xpose.msra.mxu0 %v209
    %213 = vmatprep.subr.mxu0 0.0
    %214 = vmatpush1.xpose.msra.mxu0 %v206
    %215 = vmatprep.subr.mxu0 0.0
    %216 = vmatpush1.xpose.msra.mxu0 %v203
    %217 = vmatprep.subr.mxu0 0.0
    %218 = vmatpush1.xpose.msra.mxu0 %v200
    %219 = vmatprep.subr.mxu0 0.0
    %220 = vmatpush1.xpose.msra.mxu0 %v197
    %221 = vmatprep.subr.mxu0 0.0
    %222 = vmatpush1.xpose.msra.mxu0 %v194
    %223 = vmatprep.subr.mxu0 0.0
    %224 = vmatpush1.xpose.msra.mxu0 %v191
    %225 = vmatprep.subr.mxu0 0.0
    %226 = vmatpush1.xpose.msra.mxu0 %v188
    %227 = vmatprep.subr.mxu0 0.0
    %228 = vmatpush1.xpose.msra.mxu0 %v185
    %229 = vmatprep.subr.mxu0 0.0
    %230 = vmatpush1.xpose.msra.mxu0 %v182
    %231 = vmatprep.subr.mxu0 0.0
    %232 = vmatpush1.xpose.msra.mxu0 %v179
    %233 = vmatprep.subr.mxu0 0.0
    %234 = vmatpush1.xpose.msra.mxu0 %v176
    %235 = vmatprep.subr.mxu0 0.0
    %236 = vmatpush1.xpose.msra.mxu0 %v173
    %237 = vmatprep.subr.mxu0 0.0
    %238 = vmatpush1.xpose.msra.mxu0 %v170
    %239 = vmatprep.subr.mxu0 0.0
    %240 = vmatpush1.xpose.msra.mxu0 %v167
    %241 = vmatprep.subr.mxu0 0.0
    %242 = vmatpush1.xpose.msra.mxu0 %v164
    %243 = vmatprep.subr.mxu0 0.0
    %244 = vmatpush2.xpose.msra.mxu0 0.0
    %245 = vmatprep.subr.mxu0 0.0
    %246 = vmatpush2.xpose.msra.mxu0 0.0
    %247 = vmatprep.subr.mxu0 0.0
    %248 = vmatpush2.xpose.msra.mxu0 0.0
    %249 = vmatprep.subr.mxu0 0.0
    %250 = vmatpush2.xpose.msra.mxu0 0.0
    %251 = vmatprep.subr.mxu0 0.0
    %252 = vmatpush2.xpose.msra.mxu0 0.0
    %253 = vmatprep.subr.mxu0 0.0
    %254 = vmatpush2.xpose.msra.mxu0 0.0
    %255 = vmatprep.subr.mxu0 0.0
    %256 = vmatpush2.xpose.msra.mxu0 0.0
    %257 = vmatprep.subr.mxu0 0.0
    %258 = vmatpush2.xpose.msra.mxu0 0.0
    %259 = vmatprep.subr.mxu0 0.0
    %260 = vmatpush2.xpose.msra.mxu0 0.0
    %261 = vmatprep.subr.mxu0 0.0
    %262 = vmatpush2.xpose.msra.mxu0 0.0
    %263 = vmatprep.subr.mxu0 0.0
    %264 = vmatpush2.xpose.msra.mxu0 0.0
    %265 = vmatprep.subr.mxu0 0.0
    %266 = vmatpush2.xpose.msra.mxu0 0.0
    %267 = vmatprep.subr.mxu0 0.0
    %268 = vmatpush2.xpose.msra.mxu0 0.0
    %269 = vmatprep.subr.mxu0 0.0
    %270 = vmatpush2.xpose.msra.mxu0 0.0
    %271 = vmatprep.subr.mxu0 0.0
    %272 = vmatpush2.xpose.msra.mxu0 0.0
    %273 = vmatprep.subr.mxu0 0.0
    %274 = vmatpush2.xpose.msra.mxu0 0.0
    %275 = vmatprep.mubr.f32.mxu0 0.0
    %276 = vmatmul.mubr.f32.gmra.mxu0 %v161
    %v277 = vpop.f32.mrf.mxu0
    %v278 = vadd.f32 %v157, %v277
    %v279 = vpop.f32.mrf.mxu0
    %280 = vdwg.mxu0
    %281 = vst [vmem:[#allocation2] sm:$0xff] %v278
    // Predicated region
    $region22: #{tpu_custom_call.1} parent=1 // pred_check
      _
    $region23: #{tpu_custom_call.1} parent=1 // pred_check_branch
      %283 = sbr.rel (0) target = $region25
    $region24: #{tpu_custom_call.1} parent=1 // pred_region
      %s285 = ssub.s32 128, 128
      %286 = vsyncadd [#allocation3], %s285
      %s288 = sshll.u32 [#allocation2], 4
      %s289 = int_to_ptr.vmem [resolvable:$true] %s288
      %291 = dma.vmem_to_hbm [thread:$0]  %s289, 128, %s5, [#allocation3]
    $region25: #{tpu_custom_call.1} parent=1 // pred_fallthru
      _
    // Predicated region
    $region26: #{tpu_custom_call.1} parent=1 // pred_check
      _
    $region27: #{tpu_custom_call.1} parent=1 // pred_check_branch
      %293 = sbr.rel (0) target = $region29
    $region28: #{tpu_custom_call.1} parent=1 // pred_region
      %294 = dma.done [#allocation3], 128
    $region29: #{tpu_custom_call.1} parent=1 // pred_fallthru
      _
    %295 = vsyncpa [#allocation3], 1

</llo_original>
